<compile_context>
chip_gen: v7x
topology: tpu7x:2x2x1
jax: 0.10.0
libtpu: 0.0.40
codegen_flags: <defaults>
</compile_context>

<pallas_src>
import functools
import math

import jax
import jax.numpy as jnp
from jax.experimental import pallas as pl
from jax.experimental.pallas import tpu as pltpu


# ---------------------------------------------------------------------------
# ONNX -> torch pad bookkeeping (mirrors onnx2torch2/node_converters/pad.py).
# ---------------------------------------------------------------------------
_ONNX_TO_TORCH_MODE = {"constant": "constant", "reflect": "reflect", "edge": "replicate"}


def _onnx_padding_to_torch(pads):
    middle = len(pads) // 2
    onnx_pad_begin, onnx_pad_end = pads[:middle], pads[middle:]
    onnx_pad_begin, onnx_pad_end = onnx_pad_begin[::-1], onnx_pad_end[::-1]
    torch_pads = []
    for begin, end in zip(onnx_pad_begin, onnx_pad_end):
        torch_pads.extend([begin, end])
    return torch_pads


def _onnx_to_torch_mode(mode):
    try:
        return _ONNX_TO_TORCH_MODE[mode]
    except KeyError as exc:
        raise NotImplementedError(f"{mode} mode is not implemented") from exc


def _torch_pads_to_per_dim(pads, ndim):
    """torch F.pad list (last dim first, (begin, end) pairs) -> per-dim pairs."""
    assert len(pads) % 2 == 0, "torch pads must have even length"
    num_padded = len(pads) // 2
    assert num_padded <= ndim, "more pad pairs than tensor dims"
    per_dim = [(0, 0)] * ndim
    for k in range(num_padded):
        per_dim[ndim - 1 - k] = (int(pads[2 * k]), int(pads[2 * k + 1]))
    return per_dim


# ---------------------------------------------------------------------------
# Canonicalization / block-size helpers
# ---------------------------------------------------------------------------
_MERGE_LANE_LIMIT = 1024  # keep merged (padded) lane axes from growing unboundedly


def _canonicalize(shape, per_dim):
    """Merge adjacent dims whose inner dim is un-padded.

    Un-padded inner dims always merge into an un-padded outer dim (pure
    flattening) and merge into a *padded* outer dim only while they are narrow
    (<= _MERGE_LANE_LIMIT elements) -- this keeps stores lane-dense without
    bloating a single padded slab.  Returns [(size, (begin, end)), ...] in
    outer->inner order.
    """
    groups = []
    for size, (pb, pe) in zip(reversed(shape), reversed(per_dim)):
        if groups and groups[0][1] == (0, 0) and (
            (pb == 0 and pe == 0) or groups[0][0] <= _MERGE_LANE_LIMIT
        ):
            inner = groups[0][0]
            groups[0] = (size * inner, (pb * inner, pe * inner))
        else:
            groups.insert(0, (size, (pb, pe)))
    return groups


def _pick_divisor_block(extent, cap):
    """Largest block <= cap that divides extent (leading dim: no alignment req)."""
    cap = max(1, min(int(extent), int(cap)))
    t = cap
    while extent % t:
        t -= 1
    return t


def _pick_tiled_block(extent, cap, granule):
    """Block size for a tiled last-two dim: a multiple of `granule` (or the
    full extent).  Prefers a divisor of `extent` (no ragged edge); otherwise
    falls back to a granule-aligned block with a masked boundary block."""
    cap = max(granule, min(int(extent), int(cap)))
    if cap >= extent:
        return int(extent)
    best = max(granule, (cap // granule) * granule)
    t = best
    for _ in range(4096):
        if t < granule:
            break
        if extent % t == 0:
            return t
        t -= granule
    return best  # non-dividing: Pallas masks the boundary block


# ---------------------------------------------------------------------------
# Kernel
# ---------------------------------------------------------------------------
def _pad_kernel(x_ref, o_ref, *, cval, pad_h, pad_w, halo_dims):
    dtype = o_ref.dtype

    def _interior():
        x = x_ref[...]                      # (..., H_in, W_in) -- rank 2 or 3
        lead = x.shape[:-2]
        h_in, w_in = x.shape[-2], x.shape[-1]
        hb, he = pad_h
        wb, we = pad_w

        tile = x
        # Pad the lane axis in registers: constant strips + input, one concat.
        if wb or we:
            parts = []
            if wb:
                parts.append(jnp.full(lead + (h_in, wb), cval, dtype))
            parts.append(tile)
            if we:
                parts.append(jnp.full(lead + (h_in, we), cval, dtype))
            tile = jnp.concatenate(parts, axis=-1)
        # Pad the sublane axis in registers.
        if hb or he:
            w_out = w_in + wb + we
            parts = []
            if hb:
                parts.append(jnp.full(lead + (hb, w_out), cval, dtype))
            parts.append(tile)
            if he:
                parts.append(jnp.full(lead + (he, w_out), cval, dtype))
            tile = jnp.concatenate(parts, axis=-2)

        # TODO(synk): for begin-aligned pads, separate region stores would skip
        # the in-register concat (saves one VMEM pass; matters most on v5e's
        # single vst slot).  Kept as one lane-dense full-tile store.
        o_ref[...] = tile

    if halo_dims:
        # Leading-dim padding: grid points outside the input range are pure
        # constant slabs.
        conds = [
            jnp.logical_and(pl.program_id(ax) >= b, pl.program_id(ax) < b + s)
            for ax, b, s in halo_dims
        ]
        in_bounds = functools.reduce(jnp.logical_and, conds)

        @pl.when(in_bounds)
        def _():
            _interior()

        @pl.when(jnp.logical_not(in_bounds))
        def _():
            o_ref[...] = jnp.full(o_ref.shape, cval, dtype)
    else:
        _interior()


# ---------------------------------------------------------------------------
# Wrapper
# ---------------------------------------------------------------------------
def pad_constant_pallas(x, torch_pads, constant_value, *, target_block_bytes=512 * 1024):
    ndim = x.ndim
    per_dim = _torch_pads_to_per_dim(list(torch_pads), ndim)
    # TODO(synk): negative (cropping) pads are not handled.
    assert all(b >= 0 and e >= 0 for b, e in per_dim), "negative pads not supported"

    out_shape = tuple(s + b + e for s, (b, e) in zip(x.shape, per_dim))
    if out_shape == tuple(x.shape):
        return x

    groups = _canonicalize(tuple(x.shape), per_dim)
    if len(groups) == 1:  # rank-1 input or fully-merged tensor
        groups.insert(0, (1, (0, 0)))

    c_in = tuple(s for s, _ in groups)
    c_pads = tuple(p for _, p in groups)
    c_out = tuple(s + b + e for s, (b, e) in zip(c_in, c_pads))
    r = len(groups)

    itemsize = jnp.dtype(x.dtype).itemsize
    granule = {4: 8, 2: 16, 1: 32}.get(itemsize, 8)  # sublane packing granule
    # TODO(synk): fractional constants on integer dtypes truncate (matches torch).
    cval = float(constant_value)

    h_in, w_in = c_in[-2], c_in[-1]
    h_out, w_out = c_out[-2], c_out[-1]
    pad_h, pad_w = c_pads[-2], c_pads[-1]

    if r == 2:
        if pad_h == (0, 0):
            # Rows un-padded (merged batch), lanes padded: tile the row axis.
            ta = _pick_tiled_block(
                h_in, target_block_bytes // max(1, w_out * itemsize), granule)
            grid = (pl.cdiv(h_in, ta),)
            in_block, out_block = (ta, w_in), (ta, w_out)
            in_index = out_index = lambda i: (i, 0)
            halo_dims = ()
        elif pad_w == (0, 0):
            # Rows padded, lanes un-padded (wide tail): tile the lane axis.
            tw = _pick_tiled_block(
                w_in, target_block_bytes // max(1, h_out * itemsize), 128)
            grid = (pl.cdiv(w_in, tw),)
            in_block, out_block = (h_in, tw), (h_out, tw)
            in_index = out_index = lambda i: (0, i)
            halo_dims = ()
        else:
            # Both dims of a 2-D slab padded (rare): single full-slab step.
            # TODO(synk): slabs too large for VMEM need manual-DMA row tiling
            # with arbitrary element offsets; not needed at these shapes.
            grid = (1,)
            in_block, out_block = (h_in, w_in), (h_out, w_out)
            in_index = out_index = lambda i: (0, 0)
            halo_dims = ()
    else:
        n_lead = r - 2
        lead_in, lead_out, lead_pads = c_in[:-2], c_out[:-2], c_pads[:-2]
        slab_out = h_out * w_out * itemsize
        dim0_unpadded = lead_pads[0] == (0, 0)

        if dim0_unpadded:
            # Block the merged un-padded batch axis to amortize per-step cost.
            b0 = _pick_divisor_block(
                lead_in[0], max(1, target_block_bytes // max(1, slab_out)))
            grid = (lead_in[0] // b0,) + lead_out[1:]
            in_block = (b0,) + (None,) * (n_lead - 1) + (h_in, w_in)
            out_block = (b0,) + (None,) * (n_lead - 1) + (h_out, w_out)
        else:
            grid = lead_out
            in_block = (None,) * n_lead + (h_in, w_in)
            out_block = (None,) * n_lead + (h_out, w_out)

        halo_dims = tuple(
            (a, lead_pads[a][0], lead_in[a])
            for a in range(n_lead)
            if lead_pads[a] != (0, 0)
        )

        def in_index(*gi):
            idx = []
            for a in range(n_lead):
                if lead_pads[a] == (0, 0):
                    idx.append(gi[a])
                else:
                    # Clamp halo steps onto the nearest interior block:
                    # consecutive grid steps then keep the same resident block
                    # and Pallas skips the re-fetch, so halo points cost ~no
                    # extra HBM reads.
                    idx.append(jnp.clip(gi[a] - lead_pads[a][0], 0, lead_in[a] - 1))
            return tuple(idx) + (0, 0)

        def out_index(*gi):
            return tuple(gi) + (0, 0)

    kernel = functools.partial(
        _pad_kernel, cval=cval, pad_h=pad_h, pad_w=pad_w, halo_dims=halo_dims)

    def _block_bytes(block):
        n = itemsize
        for b in block:
            if b is not None:
                n *= int(b)
        return n

    blk_bytes = _block_bytes(in_block) + _block_bytes(out_block)
    # Double-buffered in/out blocks + concat temp + headroom; >= 32 MiB helps
    # v5e's 16 MiB default, <= 48 MiB stays within v7x's 64 MiB physical VMEM.
    vmem_limit = int(min(48 * 2**20, max(32 * 2**20, 3 * blk_bytes)))

    # Useful HBM traffic only; halo re-fetches are ~eliminated by the clamped
    # input index_map above, so they are excluded from the estimate.
    bytes_accessed = int((x.size + math.prod(out_shape)) * itemsize)

    out_c = pl.pallas_call(
        kernel,
        out_shape=jax.ShapeDtypeStruct(c_out, x.dtype),
        grid=grid,
        in_specs=[pl.BlockSpec(in_block, in_index)],
        out_specs=pl.BlockSpec(out_block, out_index),
        compiler_params=pltpu.CompilerParams(
            dimension_semantics=("parallel",) * len(grid),
            vmem_limit_bytes=vmem_limit,
        ),
        cost_estimate=pl.CostEstimate(
            flops=0, transcendentals=0, bytes_accessed=bytes_accessed),
    )(x.reshape(c_in))
    return out_c.reshape(out_shape)


class OnnxPadStaticPallas:
    """Pallas equivalent of onnx2torch2 OnnxPadStatic (constant mode)."""

    def __init__(self, pads, mode="constant", constant_value=0.0):
        # TODO(synk): 'reflect' / 'replicate' padding modes are not implemented.
        if mode != "constant":
            raise NotImplementedError("Only constant-mode padding is implemented.")
        self.pads = list(pads)          # torch F.pad format (last dim first)
        self.mode = mode
        self.constant_value = float(constant_value)

    @classmethod
    def create_from_onnx_params(cls, onnx_pads, onnx_mode="constant", constant_value=0.0):
        torch_mode = _onnx_to_torch_mode(onnx_mode)
        torch_padding = _onnx_padding_to_torch(list(onnx_pads))
        # constant mode keeps the full torch pad list (mirrors
        # _torch_padding_to_mode_format in the reference module).
        return cls(pads=torch_padding, mode=torch_mode, constant_value=constant_value)

    def __call__(self, input_tensor):
        return pad_constant_pallas(input_tensor, self.pads, self.constant_value)


if __name__ == "__main__":
    key = jax.random.PRNGKey(0)
    x = jax.random.normal(key, (2, 4, 16, 16), dtype=jnp.float32)

    # 1) spatial-only pads: H (1,3), W (2,4) -> N*C merged and blocked.
    mod = OnnxPadStaticPallas.create_from_onnx_params([0, 0, 1, 2, 0, 0, 3, 4], "constant", 1.5)
    out = jax.block_until_ready(mod(x))
    ref = jnp.pad(x, [(0, 0), (0, 0), (1, 3), (2, 4)], constant_values=1.5)
    assert out.shape == ref.shape and bool(jnp.allclose(out, ref)), "spatial pads mismatch"

    # 2) channel + spatial pads: C (1,2), H (1,3), W (2,4) -> halo grid points on C.
    mod2 = OnnxPadStaticPallas.create_from_onnx_params([0, 1, 1, 2, 0, 2, 3, 4], "constant", -0.75)
    out2 = jax.block_until_ready(mod2(x))
    ref2 = jnp.pad(x, [(0, 0), (1, 2), (1, 3), (2, 4)], constant_values=-0.75)
    assert out2.shape == ref2.shape and bool(jnp.allclose(out2, ref2)), "leading-dim pads mismatch"

    # 3) channel-only pads: C (1,2) -> un-padded H*W merged into a lane-dense axis.
    mod3 = OnnxPadStaticPallas.create_from_onnx_params([0, 1, 0, 0, 0, 2, 0, 0], "constant", 3.0)
    out3 = jax.block_until_ready(mod3(x))
    ref3 = jnp.pad(x, [(0, 0), (1, 2), (0, 0), (0, 0)], constant_values=3.0)
    assert out3.shape == ref3.shape and bool(jnp.allclose(out3, ref3)), "channel-only pads mismatch"

    # 4) last-dim pads on a 2-D input, small block target -> multi-step row tiling.
    x4 = jax.random.normal(jax.random.PRNGKey(1), (64, 16), dtype=jnp.float32)
    out4 = jax.block_until_ready(
        pad_constant_pallas(x4, [2, 4], 0.25, target_block_bytes=2048))
    ref4 = jnp.pad(x4, [(0, 0), (2, 4)], constant_values=0.25)
    assert out4.shape == ref4.shape and bool(jnp.allclose(out4, ref4)), "row-tiled pads mismatch"

    # 5) leading-dim-only pads with a wide un-padded tail -> lane-tiled path.
    x5 = jax.random.normal(jax.random.PRNGKey(2), (8, 4, 512), dtype=jnp.float32)
    out5 = jax.block_until_ready(
        pad_constant_pallas(x5, [0, 0, 0, 0, 1, 2], -2.0, target_block_bytes=16384))
    ref5 = jnp.pad(x5, [(1, 2), (0, 0), (0, 0)], constant_values=-2.0)
    assert out5.shape == ref5.shape and bool(jnp.allclose(out5, ref5)), "lane-tiled pads mismatch"

    print("KERNEL_OK")
</pallas_src>

<mosaic_0001>
module attributes {stable_mosaic.version = 11 : i64} {
  func.func @_pad_kernel(%arg0: i32, %arg1: memref<8x16x16xf32, #tpu.memory_space<vmem>>, %arg2: memref<8x20x22xf32, #tpu.memory_space<vmem>>) attributes {dimension_semantics = [#tpu.dimension_semantics<parallel>], iteration_bounds = array<i64: 1>, scalar_prefetch = 0 : i64, scratch_operands = 0 : i64, tpu.core_type = #tpu.core_type<tc>, window_params = [{transform_indices = @transform_0, window_bounds = array<i64: 8, 16, 16>}, {transform_indices = @transform_1, window_bounds = array<i64: 8, 20, 22>}]} {
    %c0 = arith.constant 0 : index
    %c0_0 = arith.constant 0 : index
    %c0_1 = arith.constant 0 : index
    %0 = vector.load %arg1[%c0, %c0_0, %c0_1] : memref<8x16x16xf32, #tpu.memory_space<vmem>>, vector<8x16x16xf32>
    %cst = arith.constant 1.500000e+00 : f32
    %1 = vector.broadcast %cst : f32 to vector<8x16x2xf32>
    %cst_2 = arith.constant 1.500000e+00 : f32
    %2 = vector.broadcast %cst_2 : f32 to vector<8x16x4xf32>
    %3 = tpu.concatenate %1, %0, %2 in 2 : vector<8x16x2xf32>, vector<8x16x16xf32>, vector<8x16x4xf32> -> vector<8x16x22xf32>
    %cst_3 = arith.constant 1.500000e+00 : f32
    %4 = vector.broadcast %cst_3 : f32 to vector<8x1x22xf32>
    %cst_4 = arith.constant 1.500000e+00 : f32
    %5 = vector.broadcast %cst_4 : f32 to vector<8x3x22xf32>
    %6 = tpu.concatenate %4, %3, %5 in 1 : vector<8x1x22xf32>, vector<8x16x22xf32>, vector<8x3x22xf32> -> vector<8x20x22xf32>
    %c0_5 = arith.constant 0 : index
    %c0_6 = arith.constant 0 : index
    %c0_7 = arith.constant 0 : index
    %7 = vector.load %arg2[%c0_5, %c0_6, %c0_7] : memref<8x20x22xf32, #tpu.memory_space<vmem>>, vector<8x20x22xf32>
    tpu.vector_store %arg2[%c0_5, %c0_6, %c0_7], %6 {strides = array<i32>} : memref<8x20x22xf32, #tpu.memory_space<vmem>>, vector<8x20x22xf32>,
    return
  }
  func.func @transform_0(%arg0: i32) -> (i32, i32, i32) {
    %c0_i32 = arith.constant 0 : i32
    %c0_i32_0 = arith.constant 0 : i32
    %c0_i32_1 = arith.constant 0 : i32
    return %arg0, %c0_i32, %c0_i32_0 : i32, i32, i32
  }
  func.func @transform_1(%arg0: i32) -> (i32, i32, i32) {
    %c0_i32 = arith.constant 0 : i32
    %c0_i32_0 = arith.constant 0 : i32
    %c0_i32_1 = arith.constant 0 : i32
    return %arg0, %c0_i32, %c0_i32_0 : i32, i32, i32
  }
}

</mosaic_0001>

<llo_original>
// kernel: tpu_custom_call.1
$region0: #{tpu_custom_call.1}
  #allocation0 [shape = 'u32[]', space=smem, size = 0x4, offset = 0x4, fixed_abs, tag = 'smem constant byte address 0x4 - core index']
  #allocation1 [shape = 'u32[144,128]{1,0:T(1,128)}', space=vmem, size = 0x12000, scoped, tag = 'internal scratch']
  %s0 = inlined_call_operand.hbm [shape: f32[8,16,16], index: 0, kind: input, shape index: {}]
  %s1 = inlined_call_operand.vmem [shape: f32[8,20,22], index: 1, kind: output, shape index: {}]
  %s2 = sld [smem:[#allocation0]]
  $region18: #{tpu_custom_call.1} parent=0
    _
  %s4 = ssub.s32 1, %s2
  %s5 = scalar_select 0, %s4, %s2
  $region1: #{tpu_custom_call.1} parent=0
    #allocation2 [shape = 'u8[65536]{0}', space=vmem, size = 0x10000, scoped, tag = 'input window, operand 0, single buffered']
    #allocation3 [shape = 's32[1]{0}', space=sflag, size = 0x4, scoped, tag = 'scoped memory for tpu_custom_call.1']
    %6 = vsyncpa [#allocation3], 0
    // Predicated region
    $region2: #{tpu_custom_call.1} parent=1 // pred_check
      _
    $region3: #{tpu_custom_call.1} parent=1 // pred_check_branch
      %8 = sbr.rel (0) target = $region5
    $region4: #{tpu_custom_call.1} parent=1 // pred_region
      %s10 = ssub.s32 2048, 2048
      %11 = vsyncadd [#allocation3], %s10
      %s12 = sshll.u32 [#allocation2], 4
      %s13 = int_to_ptr.vmem [resolvable:$true] %s12
      %18 = dma.hbm_to_vmem [thread:$0]  %s0, 2048, %s13, [#allocation3], 128, 128, 8
    $region5: #{tpu_custom_call.1} parent=1 // pred_fallthru
      _
    // Predicated region
    $region6: #{tpu_custom_call.1} parent=1 // pred_check
      _
    $region7: #{tpu_custom_call.1} parent=1 // pred_check_branch
      %20 = sbr.rel (0) target = $region9
    $region8: #{tpu_custom_call.1} parent=1 // pred_region
      %21 = dma.done [#allocation3], 2048
    $region9: #{tpu_custom_call.1} parent=1 // pred_fallthru
      _
    %v22 = vld [vmem:[#allocation2] sm:$0xff]
    %v23 = vld [vmem:[#allocation2 + $0x8] sm:$0xff]
    %v24 = vld [vmem:[#allocation2 + $0x10] sm:$0xff]
    %v25 = vld [vmem:[#allocation2 + $0x18] sm:$0xff]
    %v26 = vld [vmem:[#allocation2 + $0x20] sm:$0xff]
    %v27 = vld [vmem:[#allocation2 + $0x28] sm:$0xff]
    %v28 = vld [vmem:[#allocation2 + $0x30] sm:$0xff]
    %v29 = vld [vmem:[#allocation2 + $0x38] sm:$0xff]
    %v30 = vld [vmem:[#allocation2 + $0x40] sm:$0xff]
    %v31 = vld [vmem:[#allocation2 + $0x48] sm:$0xff]
    %v32 = vld [vmem:[#allocation2 + $0x50] sm:$0xff]
    %v33 = vld [vmem:[#allocation2 + $0x58] sm:$0xff]
    %v34 = vld [vmem:[#allocation2 + $0x60] sm:$0xff]
    %v35 = vld [vmem:[#allocation2 + $0x68] sm:$0xff]
    %v36 = vld [vmem:[#allocation2 + $0x70] sm:$0xff]
    %v37 = vld [vmem:[#allocation2 + $0x78] sm:$0xff]
    %54 = vrot.lane.b32.xlu0 %v22, 2
    %v55 = vpop.permute.xlu0 %54
    %56 = vrot.lane.b32.xlu0 %v23, 2
    %v57 = vpop.permute.xlu0 %56
    %58 = vrot.lane.b32.xlu0 %v24, 2
    %v59 = vpop.permute.xlu0 %58
    %60 = vrot.lane.b32.xlu0 %v25, 2
    %v61 = vpop.permute.xlu0 %60
    %62 = vrot.lane.b32.xlu0 %v26, 2
    %v63 = vpop.permute.xlu0 %62
    %64 = vrot.lane.b32.xlu0 %v27, 2
    %v65 = vpop.permute.xlu0 %64
    %66 = vrot.lane.b32.xlu0 %v28, 2
    %v67 = vpop.permute.xlu0 %66
    %68 = vrot.lane.b32.xlu0 %v29, 2
    %v69 = vpop.permute.xlu0 %68
    %70 = vrot.lane.b32.xlu0 %v30, 2
    %v71 = vpop.permute.xlu0 %70
    %72 = vrot.lane.b32.xlu0 %v31, 2
    %v73 = vpop.permute.xlu0 %72
    %74 = vrot.lane.b32.xlu0 %v32, 2
    %v75 = vpop.permute.xlu0 %74
    %76 = vrot.lane.b32.xlu0 %v33, 2
    %v77 = vpop.permute.xlu0 %76
    %78 = vrot.lane.b32.xlu0 %v34, 2
    %v79 = vpop.permute.xlu0 %78
    %80 = vrot.lane.b32.xlu0 %v35, 2
    %v81 = vpop.permute.xlu0 %80
    %82 = vrot.lane.b32.xlu0 %v36, 2
    %v83 = vpop.permute.xlu0 %82
    %84 = vrot.lane.b32.xlu0 %v37, 2
    %v85 = vpop.permute.xlu0 %84
    %vm102 = vcmask 15360
    %v103 = vsel %vm102, 1.5, %v55
    %v104 = vsel %vm102, 1.5, %v57
    %v105 = vsel %vm102, 1.5, %v59
    %v106 = vsel %vm102, 1.5, %v61
    %v107 = vsel %vm102, 1.5, %v63
    %v108 = vsel %vm102, 1.5, %v65
    %v109 = vsel %vm102, 1.5, %v67
    %v110 = vsel %vm102, 1.5, %v69
    %v111 = vsel %vm102, 1.5, %v71
    %v112 = vsel %vm102, 1.5, %v73
    %v113 = vsel %vm102, 1.5, %v75
    %v114 = vsel %vm102, 1.5, %v77
    %v115 = vsel %vm102, 1.5, %v79
    %v116 = vsel %vm102, 1.5, %v81
    %v117 = vsel %vm102, 1.5, %v83
    %v118 = vsel %vm102, 1.5, %v85
    %vm119 = vcmask 146432
    %v120 = vsel %vm119, %v103, 1.5
    %v121 = vsel %vm119, %v104, 1.5
    %v122 = vsel %vm119, %v105, 1.5
    %v123 = vsel %vm119, %v106, 1.5
    %v124 = vsel %vm119, %v107, 1.5
    %v125 = vsel %vm119, %v108, 1.5
    %v126 = vsel %vm119, %v109, 1.5
    %v127 = vsel %vm119, %v110, 1.5
    %v128 = vsel %vm119, %v111, 1.5
    %v129 = vsel %vm119, %v112, 1.5
    %v130 = vsel %vm119, %v113, 1.5
    %v131 = vsel %vm119, %v114, 1.5
    %v132 = vsel %vm119, %v115, 1.5
    %v133 = vsel %vm119, %v116, 1.5
    %v134 = vsel %vm119, %v117, 1.5
    %v135 = vsel %vm119, %v118, 1.5
    %vm152 = vcmask 1040384
    %v153 = vrot.slane %v120, 7
    %v154 = vrot.slane %v121, 7
    %v155 = vsel %vm152, %v153, %v154
    %v156 = vrot.slane %v122, 7
    %v157 = vrot.slane %v123, 7
    %v158 = vsel %vm152, %v156, %v157
    %v159 = vrot.slane %v124, 7
    %v160 = vrot.slane %v125, 7
    %v161 = vsel %vm152, %v159, %v160
    %v162 = vrot.slane %v126, 7
    %v163 = vrot.slane %v127, 7
    %v164 = vsel %vm152, %v162, %v163
    %v165 = vrot.slane %v128, 7
    %v166 = vrot.slane %v129, 7
    %v167 = vsel %vm152, %v165, %v166
    %v168 = vrot.slane %v130, 7
    %v169 = vrot.slane %v131, 7
    %v170 = vsel %vm152, %v168, %v169
    %v171 = vrot.slane %v132, 7
    %v172 = vrot.slane %v133, 7
    %v173 = vsel %vm152, %v171, %v172
    %v174 = vrot.slane %v134, 7
    %v175 = vrot.slane %v135, 7
    %v176 = vsel %vm152, %v174, %v175
    %v201 = vsel %vm152, 1.5, %v153
    %v202 = vsel %vm152, 1.5, %v156
    %v203 = vsel %vm152, 1.5, %v159
    %v204 = vsel %vm152, 1.5, %v162
    %v205 = vsel %vm152, 1.5, %v165
    %v206 = vsel %vm152, 1.5, %v168
    %v207 = vsel %vm152, 1.5, %v171
    %v208 = vsel %vm152, 1.5, %v174
    %v209 = vsel %vm152, %v154, 1.5
    %v210 = vsel %vm152, %v157, 1.5
    %v211 = vsel %vm152, %v160, 1.5
    %v212 = vsel %vm152, %v163, 1.5
    %v213 = vsel %vm152, %v166, 1.5
    %v214 = vsel %vm152, %v169, 1.5
    %v215 = vsel %vm152, %v172, 1.5
    %v216 = vsel %vm152, %v175, 1.5
    %vm217 = vcmask 179200
    %218 = vst.msk [vmem:[%s1] sm:$0xff] %vm217, %v201
    %219 = vst.msk [vmem:[%s1 + $0x8] sm:$0xff] %vm217, %v155
    %vm220 = vcmask 175104
    %221 = vst.msk [vmem:[%s1 + $0x10] sm:$0xf] %vm220, %v209
    %222 = vst.msk [vmem:[%s1 + $0x18] sm:$0xff] %vm217, %v202
    %223 = vst.msk [vmem:[%s1 + $0x20] sm:$0xff] %vm217, %v158
    %224 = vst.msk [vmem:[%s1 + $0x28] sm:$0xf] %vm220, %v210
    %225 = vst.msk [vmem:[%s1 + $0x30] sm:$0xff] %vm217, %v203
    %226 = vst.msk [vmem:[%s1 + $0x38] sm:$0xff] %vm217, %v161
    %227 = vst.msk [vmem:[%s1 + $0x40] sm:$0xf] %vm220, %v211
    %228 = vst.msk [vmem:[%s1 + $0x48] sm:$0xff] %vm217, %v204
    %229 = vst.msk [vmem:[%s1 + $0x50] sm:$0xff] %vm217, %v164
    %230 = vst.msk [vmem:[%s1 + $0x58] sm:$0xf] %vm220, %v212
    %231 = vst.msk [vmem:[%s1 + $0x60] sm:$0xff] %vm217, %v205
    %232 = vst.msk [vmem:[%s1 + $0x68] sm:$0xff] %vm217, %v167
    %233 = vst.msk [vmem:[%s1 + $0x70] sm:$0xf] %vm220, %v213
    %234 = vst.msk [vmem:[%s1 + $0x78] sm:$0xff] %vm217, %v206
    %235 = vst.msk [vmem:[%s1 + $0x80] sm:$0xff] %vm217, %v170
    %236 = vst.msk [vmem:[%s1 + $0x88] sm:$0xf] %vm220, %v214
    %237 = vst.msk [vmem:[%s1 + $0x90] sm:$0xff] %vm217, %v207
    %238 = vst.msk [vmem:[%s1 + $0x98] sm:$0xff] %vm217, %v173
    %239 = vst.msk [vmem:[%s1 + $0xa0] sm:$0xf] %vm220, %v215
    %240 = vst.msk [vmem:[%s1 + $0xa8] sm:$0xff] %vm217, %v208
    %241 = vst.msk [vmem:[%s1 + $0xb0] sm:$0xff] %vm217, %v176
    %242 = vst.msk [vmem:[%s1 + $0xb8] sm:$0xf] %vm220, %v216
    // Predicated region
    $region10: #{tpu_custom_call.1} parent=1 // pred_check
      _
    $region11: #{tpu_custom_call.1} parent=1 // pred_check_branch
      %244 = sbr.rel (0) target = $region13
    $region12: #{tpu_custom_call.1} parent=1 // pred_region
      _
    $region13: #{tpu_custom_call.1} parent=1 // pred_fallthru
      _
    // Predicated region
    $region14: #{tpu_custom_call.1} parent=1 // pred_check
      _
    $region15: #{tpu_custom_call.1} parent=1 // pred_check_branch
      %246 = sbr.rel (0) target = $region17
    $region16: #{tpu_custom_call.1} parent=1 // pred_region
      _
    $region17: #{tpu_custom_call.1} parent=1 // pred_fallthru
      _
    %247 = vsyncpa [#allocation3], 1

</llo_original>
